<compile_context>
chip_gen: v5e
topology: v5e:2x2
jax: 0.10.0
libtpu: 0.0.40
codegen_flags: <defaults>
</compile_context>

<pallas_src>
import jax
import jax.numpy as jnp
from jax.experimental import pallas as pl
from jax.experimental.pallas import tpu as pltpu


def _round_up(x: int, m: int) -> int:
    return (x + m - 1) // m * m


def _cdiv(a: int, b: int) -> int:
    return (a + b - 1) // b


def _mlp_kernel(x_ref, w1_ref, b1_ref, w2_ref, b2_ref, o_ref, acc_ref):
    # x_ref:  (TM, K_p)            native dtype (f32 / bf16)
    # w1_ref: (K_p, TH), b1_ref: (1, TH)
    # w2_ref: (TH, TN), b2_ref: (1, TN)
    # o_ref:  (TM, TN)
    # acc_ref: (TM, TN) f32 scratch, persists across the H (reduction) axis.
    h_idx = pl.program_id(2)

    @pl.when(h_idx == 0)
    def _init():
        acc_ref[...] = jnp.zeros_like(acc_ref)

    # fc1 chunk: native-dtype operands straight into the MXU, f32 accumulation.
    h = jnp.dot(x_ref[...], w1_ref[...], preferred_element_type=jnp.float32)
    h = h + b1_ref[...].astype(jnp.float32)          # bias add in f32 (VPU)
    h = jnp.maximum(h, 0.0)                          # ReLU (VPU)

    # Cast back to the model dtype so fc2 also runs on the fast MXU path
    # (no-op when the model is f32; intentional rounding for bf16).
    h = h.astype(x_ref.dtype)

    # fc2 partial: accumulate this hidden chunk's contribution in f32.
    acc_ref[...] += jnp.dot(h, w2_ref[...], preferred_element_type=jnp.float32)

    @pl.when(h_idx == pl.num_programs(2) - 1)
    def _finalize():
        o_ref[...] = (acc_ref[...] + b2_ref[...].astype(jnp.float32)).astype(o_ref.dtype)


def _pad2d(a, rows, cols):
    pr, pc = rows - a.shape[0], cols - a.shape[1]
    if pr == 0 and pc == 0:
        return a          # fast path: no HBM copy when already aligned
    return jnp.pad(a, ((0, pr), (0, pc)))


def mlp_forward(x, w1, b1, w2, b2, *, tile_m=None, tile_h=None, tile_n=None):
    """relu(x @ w1 + b1) @ w2 + b2.

    x: (M, K); w1: (K, H); b1: (H,); w2: (H, N); b2: (N,) -> (M, N).
    tile_m / tile_h / tile_n override the automatic tiling: tile_h < H selects
    the hidden-dim streamed path, tile_n < N splits output columns (e.g. to
    occupy both v7x TensorCores when M is small).
    """
    M, K = x.shape
    Kw, H = w1.shape
    Hw, N = w2.shape
    assert K == Kw and H == Hw and b1.shape == (H,) and b2.shape == (N,)

    dtype = x.dtype
    act_isz = jnp.dtype(dtype).itemsize
    w_isz = jnp.dtype(w1.dtype).itemsize
    sublane = {4: 8, 2: 16, 1: 32}.get(act_isz, 8)

    # Lane-dense feature padding: multiples of 128 on every lane axis.  128 is
    # the safe default across generations (fills v5e's 4x128 MXU; on v6e/v7x
    # it is half-width on the padded tails only).
    K_p = _round_up(K, 128)
    H_p = _round_up(H, 128)
    N_p = _round_up(N, 128)

    # ---- M tiling: target 256 (512 for long M), clamped to the batch ----
    m_tight = _round_up(M, sublane)
    tm = tile_m if tile_m is not None else (512 if m_tight >= 2048 else 256)
    tm = max(min(_round_up(int(tm), sublane), m_tight), sublane)

    # ---- Generation-aware VMEM budget ----
    try:
        vmem_cap = int(pltpu.get_tpu_info().vmem_capacity_bytes)
    except Exception:
        vmem_cap = 64 << 20          # conservative fallback (v7x per-core)
    budget = max(int(vmem_cap * 0.80), 32 << 20)   # ~20% headroom for compiler scratch

    def vmem_estimate(tm_, th_, tn_, x_bufs):
        m_t = _cdiv(m_tight, tm_)
        h_t = _cdiv(H_p, th_)
        n_t = _cdiv(N_p, tn_)
        xb = 1 if m_t == 1 else x_bufs
        w1b = 1 if h_t == 1 else 2
        w2b = 1 if (h_t == 1 and n_t == 1) else 2
        b2b = 1 if n_t == 1 else 2
        ob = 1 if (m_t == 1 and n_t == 1) else 2
        return (xb * tm_ * K_p * act_isz
                + w1b * (K_p + 1) * th_ * w_isz
                + w2b * th_ * tn_ * w_isz
                + b2b * tn_ * w_isz
                + ob * tm_ * tn_ * act_isz
                + tm_ * tn_ * 4            # f32 accumulator scratch
                + tm_ * th_ * 4            # fc1 f32 intermediate
                + (2 << 20))               # fixed headroom

    # ---- H / N chunking: weight-resident when it fits, streamed otherwise ----
    th = min(_round_up(int(tile_h), 128), H_p) if tile_h is not None else H_p
    tn = min(_round_up(int(tile_n), 128), N_p) if tile_n is not None else N_p
    if tile_h is None:
        while th > 128 and vmem_estimate(tm, th, tn, 2) > budget:
            th = _round_up(th // 2, 128)
    if tile_n is None:
        while tn > 128 and vmem_estimate(tm, th, tn, 2) > budget:
            tn = _round_up(tn // 2, 128)
    if tile_m is None:
        while tm > sublane and vmem_estimate(tm, th, tn, 2) > budget:
            tm = _round_up(tm // 2, sublane)
    # TODO(synk): if (sublane, 128, 128) tiles still exceed the budget
    # (extreme input_dim), add a K grid axis as well.

    # Rebalance tile_m so the last tile wastes at most one sublane multiple.
    m_tiles = _cdiv(m_tight, tm)
    tm = _round_up(_cdiv(m_tight, m_tiles), sublane)
    M_p = tm * m_tiles

    H_f = _round_up(H_p, th)
    N_f = _round_up(N_p, tn)
    h_tiles = H_f // th
    n_tiles = N_f // tn

    # Deeper x buffering when the M loop is long and the x tile is tiny
    # (hides the x DMA behind >1 step of compute at negligible VMEM cost).
    x_bufs = 2
    if (m_tiles >= 4 and tm * K_p * act_isz <= (2 << 20)
            and vmem_estimate(tm, th, tn, 3) <= budget):
        x_bufs = 3

    # ---- Zero-padding (no-op when already aligned; pre-pad weights once at
    # init in production to avoid the per-call copy entirely). Padded hidden /
    # output columns contribute exactly zero; padded batch rows do NOT (they
    # hold relu(b1) @ W2 + b2) and are removed by the final slice. ----
    x_p = _pad2d(x, M_p, K_p)
    w1_p = _pad2d(w1, K_p, H_f)
    w2_p = _pad2d(w2, H_f, N_f)
    b1_p = _pad2d(b1.reshape(1, H), 1, H_f)
    b2_p = _pad2d(b2.reshape(1, N), 1, N_f)

    # ---- BlockSpecs: single-buffer every block whose index never changes ----
    resident = pl.Buffered(buffer_count=1)

    def spec(shape, index_map, *, constant=False, buffers=2):
        if constant:
            return pl.BlockSpec(shape, index_map, pipeline_mode=resident)
        if buffers != 2:
            return pl.BlockSpec(shape, index_map,
                                pipeline_mode=pl.Buffered(buffer_count=buffers))
        return pl.BlockSpec(shape, index_map)

    in_specs = [
        spec((tm, K_p), lambda i, j, h: (i, 0),
             constant=(m_tiles == 1), buffers=x_bufs),                       # x
        spec((K_p, th), lambda i, j, h: (0, h), constant=(h_tiles == 1)),    # W1
        spec((1, th), lambda i, j, h: (0, h), constant=(h_tiles == 1)),      # b1
        spec((th, tn), lambda i, j, h: (h, j),
             constant=(h_tiles == 1 and n_tiles == 1)),                      # W2
        spec((1, tn), lambda i, j, h: (0, j), constant=(n_tiles == 1)),      # b2
    ]
    out_spec = pl.BlockSpec((tm, tn), lambda i, j, h: (i, j))

    # Advisory cost estimate for XLA's scheduler.
    w1_reads = 1 if h_tiles == 1 else m_tiles * n_tiles
    w2_reads = 1 if (h_tiles == 1 and n_tiles == 1) else m_tiles
    cost = pl.CostEstimate(
        flops=2 * M_p * (K_p * H_f * n_tiles + H_f * N_f),
        transcendentals=0,
        bytes_accessed=(M_p * K_p + M_p * N_f) * act_isz
        + w1_reads * (K_p + 1) * H_f * w_isz
        + w2_reads * (H_f + 1) * N_f * w_isz,
    )

    out_p = pl.pallas_call(
        _mlp_kernel,
        out_shape=jax.ShapeDtypeStruct((M_p, N_f), dtype),
        grid_spec=pltpu.PrefetchScalarGridSpec(
            num_scalar_prefetch=0,
            grid=(m_tiles, n_tiles, h_tiles),
            in_specs=in_specs,
            out_specs=out_spec,
            scratch_shapes=[pltpu.VMEM((tm, tn), jnp.float32)],
        ),
        compiler_params=pltpu.CompilerParams(
            # M / N axes are independent (megacore-shardable); the H axis is
            # the fc2 reduction and must stay "arbitrary" (and last).
            dimension_semantics=("parallel", "parallel", "arbitrary"),
            vmem_limit_bytes=budget,
        ),
        cost_estimate=cost,
    )(x_p, w1_p, b1_p, w2_p, b2_p)

    # Padded batch rows hold relu(b1) @ W2 + b2 (nonzero); this slice is part
    # of correctness -- keep it.
    return out_p[:M, :N]


def reference_mlp(x, w1, b1, w2, b2):
    h = jnp.maximum(x @ w1 + b1, 0.0)
    return h @ w2 + b2


if __name__ == "__main__":
    # Small shapes consistent with the module: batch=8, input_dim=16,
    # hidden_dim=32, output_dim=8.
    batch, input_dim, hidden_dim, output_dim = 8, 16, 32, 8

    key = jax.random.PRNGKey(0)
    kx, kw1, kb1, kw2, kb2 = jax.random.split(key, 5)

    x = jax.random.normal(kx, (batch, input_dim), dtype=jnp.float32)

    # Deterministic init (uniform, scale 1/sqrt(fan_in) like PyTorch Linear),
    # stored as (in, out) for the kernel.
    lim1 = 1.0 / jnp.sqrt(input_dim)
    lim2 = 1.0 / jnp.sqrt(hidden_dim)
    w1 = jax.random.uniform(kw1, (input_dim, hidden_dim),
                            minval=-lim1, maxval=lim1, dtype=jnp.float32)
    b1 = jax.random.uniform(kb1, (hidden_dim,),
                            minval=-lim1, maxval=lim1, dtype=jnp.float32)
    w2 = jax.random.uniform(kw2, (hidden_dim, output_dim),
                            minval=-lim2, maxval=lim2, dtype=jnp.float32)
    b2 = jax.random.uniform(kb2, (output_dim,),
                            minval=-lim2, maxval=lim2, dtype=jnp.float32)

    # 1) f32 weight-resident fused path: exact agreement with the reference.
    out = jax.block_until_ready(mlp_forward(x, w1, b1, w2, b2))
    ref = reference_mlp(x, w1, b1, w2, b2)
    assert out.shape == (batch, output_dim)
    assert jnp.allclose(out, ref, atol=1e-5, rtol=1e-5), "f32 resident path mismatch"

    # 2) bf16: native MXU operands with f32 accumulation; hidden activations
    #    are re-quantized to bf16 before fc2 (intentional) -> relaxed tol.
    xb, w1b, b1b, w2b, b2b = (a.astype(jnp.bfloat16) for a in (x, w1, b1, w2, b2))
    out_bf16 = jax.block_until_ready(mlp_forward(xb, w1b, b1b, w2b, b2b))
    ref_bf16 = reference_mlp(*(a.astype(jnp.float32) for a in (xb, w1b, b1b, w2b, b2b)))
    assert out_bf16.shape == (batch, output_dim)
    assert jnp.allclose(out_bf16.astype(jnp.float32), ref_bf16,
                        atol=5e-2, rtol=5e-2), "bf16 mismatch vs reference"

    # 3) Streamed / multi-tile path (forced small H and N tiles): exercises the
    #    3-axis grid, the f32 accumulator and the h==0 / h==last init/finalize.
    hd_s, od_s = 160, 192
    ks = jax.random.split(jax.random.PRNGKey(1), 4)
    lim_s = 1.0 / jnp.sqrt(hd_s)
    w1s = jax.random.uniform(ks[0], (input_dim, hd_s),
                             minval=-lim1, maxval=lim1, dtype=jnp.float32)
    b1s = jax.random.uniform(ks[1], (hd_s,),
                             minval=-lim1, maxval=lim1, dtype=jnp.float32)
    w2s = jax.random.uniform(ks[2], (hd_s, od_s),
                             minval=-lim_s, maxval=lim_s, dtype=jnp.float32)
    b2s = jax.random.uniform(ks[3], (od_s,),
                             minval=-lim_s, maxval=lim_s, dtype=jnp.float32)
    out_s = jax.block_until_ready(
        mlp_forward(x, w1s, b1s, w2s, b2s, tile_h=128, tile_n=128))
    ref_s = reference_mlp(x, w1s, b1s, w2s, b2s)
    assert out_s.shape == (batch, od_s)
    assert jnp.allclose(out_s, ref_s, atol=1e-5, rtol=1e-5), "streamed path mismatch"

    print("KERNEL_OK")
</pallas_src>

<mosaic_0001>
module attributes {stable_mosaic.version = 11 : i64} {
  func.func @_mlp_kernel(%arg0: i32, %arg1: i32, %arg2: i32, %arg3: memref<8x128xf32, #tpu.memory_space<vmem>>, %arg4: memref<128x128xf32, #tpu.memory_space<vmem>>, %arg5: memref<1x128xf32, #tpu.memory_space<vmem>>, %arg6: memref<128x128xf32, #tpu.memory_space<vmem>>, %arg7: memref<1x128xf32, #tpu.memory_space<vmem>>, %arg8: memref<8x128xf32, #tpu.memory_space<vmem>>, %arg9: memref<8x128xf32, #tpu.memory_space<vmem>>) attributes {dimension_semantics = [#tpu.dimension_semantics<parallel>, #tpu.dimension_semantics<parallel>, #tpu.dimension_semantics<arbitrary>], iteration_bounds = array<i64: 1, 1, 1>, scalar_prefetch = 0 : i64, scratch_operands = 1 : i64, tpu.core_type = #tpu.core_type<tc>, window_params = [{pipeline_mode = #tpu.pipeline_mode<synchronous>, transform_indices = @transform_0, window_bounds = array<i64: 8, 128>}, {pipeline_mode = #tpu.pipeline_mode<synchronous>, transform_indices = @transform_1, window_bounds = array<i64: 128, 128>}, {pipeline_mode = #tpu.pipeline_mode<synchronous>, transform_indices = @transform_2, window_bounds = array<i64: 1, 128>}, {pipeline_mode = #tpu.pipeline_mode<synchronous>, transform_indices = @transform_3, window_bounds = array<i64: 128, 128>}, {pipeline_mode = #tpu.pipeline_mode<synchronous>, transform_indices = @transform_4, window_bounds = array<i64: 1, 128>}, {transform_indices = @transform_5, window_bounds = array<i64: 8, 128>}]} {
    %c0_i32 = arith.constant 0 : i32
    %0 = arith.cmpi eq, %arg2, %c0_i32 : i32
    %1 = arith.extui %0 : i1 to i32
    %c0_i32_0 = arith.constant 0 : i32
    %2 = arith.cmpi ne, %1, %c0_i32_0 : i32
    scf.if %2 {
      %cst_16 = arith.constant 0.000000e+00 : f32
      %19 = vector.broadcast %cst_16 : f32 to vector<8x128xf32>
      %c0_17 = arith.constant 0 : index
      %c0_18 = arith.constant 0 : index
      %20 = vector.load %arg9[%c0_17, %c0_18] : memref<8x128xf32, #tpu.memory_space<vmem>>, vector<8x128xf32>
      tpu.vector_store %arg9[%c0_17, %c0_18], %19 {strides = array<i32>} : memref<8x128xf32, #tpu.memory_space<vmem>>, vector<8x128xf32>,
    } else {
    }
    %c0 = arith.constant 0 : index
    %c0_1 = arith.constant 0 : index
    %3 = vector.load %arg3[%c0, %c0_1] : memref<8x128xf32, #tpu.memory_space<vmem>>, vector<8x128xf32>
    %c0_2 = arith.constant 0 : index
    %c0_3 = arith.constant 0 : index
    %4 = vector.load %arg4[%c0_2, %c0_3] : memref<128x128xf32, #tpu.memory_space<vmem>>, vector<128x128xf32>
    %cst = arith.constant dense<0.000000e+00> : vector<8x128xf32>
    %5 = tpu.matmul %3, %4, %cst {dimension_numbers = #tpu.dot_dimension_numbers<[1], [0], [0], [1], [0, 0, 1, 1], [], []>} : vector<8x128xf32>, vector<128x128xf32>, vector<8x128xf32> -> vector<8x128xf32>
    %c0_4 = arith.constant 0 : index
    %c0_5 = arith.constant 0 : index
    %6 = vector.load %arg5[%c0_4, %c0_5] : memref<1x128xf32, #tpu.memory_space<vmem>>, vector<1x128xf32>
    %7 = vector.broadcast %6 : vector<1x128xf32> to vector<8x128xf32>
    %8 = arith.addf %5, %7 : vector<8x128xf32>
    %cst_6 = arith.constant 0.000000e+00 : f32
    %9 = vector.broadcast %cst_6 : f32 to vector<8x128xf32>
    %10 = arith.maximumf %8, %9 : vector<8x128xf32>
    %c0_7 = arith.constant 0 : index
    %c0_8 = arith.constant 0 : index
    %11 = vector.load %arg9[%c0_7, %c0_8] : memref<8x128xf32, #tpu.memory_space<vmem>>, vector<8x128xf32>
    %c0_9 = arith.constant 0 : index
    %c0_10 = arith.constant 0 : index
    %12 = vector.load %arg6[%c0_9, %c0_10] : memref<128x128xf32, #tpu.memory_space<vmem>>, vector<128x128xf32>
    %cst_11 = arith.constant dense<0.000000e+00> : vector<8x128xf32>
    %13 = tpu.matmul %10, %12, %cst_11 {dimension_numbers = #tpu.dot_dimension_numbers<[1], [0], [0], [1], [0, 0, 1, 1], [], []>} : vector<8x128xf32>, vector<128x128xf32>, vector<8x128xf32> -> vector<8x128xf32>
    %14 = arith.addf %11, %13 : vector<8x128xf32>
    %c0_12 = arith.constant 0 : index
    %c0_13 = arith.constant 0 : index
    %15 = vector.load %arg9[%c0_12, %c0_13] : memref<8x128xf32, #tpu.memory_space<vmem>>, vector<8x128xf32>
    tpu.vector_store %arg9[%c0_12, %c0_13], %14 {strides = array<i32>} : memref<8x128xf32, #tpu.memory_space<vmem>>, vector<8x128xf32>,
    %c0_i32_14 = arith.constant 0 : i32
    %16 = arith.cmpi eq, %arg2, %c0_i32_14 : i32
    %17 = arith.extui %16 : i1 to i32
    %c0_i32_15 = arith.constant 0 : i32
    %18 = arith.cmpi ne, %17, %c0_i32_15 : i32
    scf.if %18 {
      %c0_16 = arith.constant 0 : index
      %c0_17 = arith.constant 0 : index
      %19 = vector.load %arg9[%c0_16, %c0_17] : memref<8x128xf32, #tpu.memory_space<vmem>>, vector<8x128xf32>
      %c0_18 = arith.constant 0 : index
      %c0_19 = arith.constant 0 : index
      %20 = vector.load %arg7[%c0_18, %c0_19] : memref<1x128xf32, #tpu.memory_space<vmem>>, vector<1x128xf32>
      %21 = vector.broadcast %20 : vector<1x128xf32> to vector<8x128xf32>
      %22 = arith.addf %19, %21 : vector<8x128xf32>
      %c0_20 = arith.constant 0 : index
      %c0_21 = arith.constant 0 : index
      %23 = vector.load %arg8[%c0_20, %c0_21] : memref<8x128xf32, #tpu.memory_space<vmem>>, vector<8x128xf32>
      tpu.vector_store %arg8[%c0_20, %c0_21], %22 {strides = array<i32>} : memref<8x128xf32, #tpu.memory_space<vmem>>, vector<8x128xf32>,
    } else {
    }
    return
  }
  func.func @transform_0(%arg0: i32, %arg1: i32, %arg2: i32) -> (i32, i32) {
    %c0_i32 = arith.constant 0 : i32
    %c0_i32_0 = arith.constant 0 : i32
    return %arg0, %c0_i32 : i32, i32
  }
  func.func @transform_1(%arg0: i32, %arg1: i32, %arg2: i32) -> (i32, i32) {
    %c0_i32 = arith.constant 0 : i32
    %c0_i32_0 = arith.constant 0 : i32
    return %c0_i32, %arg2 : i32, i32
  }
  func.func @transform_2(%arg0: i32, %arg1: i32, %arg2: i32) -> (i32, i32) {
    %c0_i32 = arith.constant 0 : i32
    %c0_i32_0 = arith.constant 0 : i32
    return %c0_i32, %arg2 : i32, i32
  }
  func.func @transform_3(%arg0: i32, %arg1: i32, %arg2: i32) -> (i32, i32) {
    %c0_i32 = arith.constant 0 : i32
    return %arg2, %arg1 : i32, i32
  }
  func.func @transform_4(%arg0: i32, %arg1: i32, %arg2: i32) -> (i32, i32) {
    %c0_i32 = arith.constant 0 : i32
    %c0_i32_0 = arith.constant 0 : i32
    return %c0_i32, %arg1 : i32, i32
  }
  func.func @transform_5(%arg0: i32, %arg1: i32, %arg2: i32) -> (i32, i32) {
    %c0_i32 = arith.constant 0 : i32
    return %arg0, %arg1 : i32, i32
  }
}

</mosaic_0001>

<llo_original>
// kernel: tpu_custom_call.1
$region0: #{tpu_custom_call.1}
  #allocation0 [shape = 'u32[]', space=smem, size = 0x4, offset = 0x4, fixed_abs, tag = 'smem constant byte address 0x4 - core index']
  #allocation1 [shape = 'u32[72,128]{1,0:T(1,128)}', space=vmem, size = 0x9000, scoped, tag = 'internal scratch']
  #allocation2 [shape = 'f32[8,128]{1,0:T(8,128)}', space=vmem, size = 0x1000, scoped, tag = 'scratch operand']
  %s0 = inlined_call_operand.hbm [shape: f32[8,128], index: 0, kind: input, shape index: {}]
  %s1 = inlined_call_operand.hbm [shape: f32[128,128], index: 1, kind: input, shape index: {}]
  %s2 = inlined_call_operand.vmem [shape: f32[1,128], index: 2, kind: input, shape index: {}]
  %s3 = inlined_call_operand.hbm [shape: f32[128,128], index: 3, kind: input, shape index: {}]
  %s4 = inlined_call_operand.vmem [shape: f32[1,128], index: 4, kind: input, shape index: {}]
  %s5 = inlined_call_operand.hbm [shape: f32[8,128], index: 5, kind: output, shape index: {}]
  %s6 = sld [smem:[#allocation0]]
  $region50: #{tpu_custom_call.1} parent=0
    _
  %s8 = ssub.s32 1, %s6
  %s9 = scalar_select 0, %s8, %s6
  $region1: #{tpu_custom_call.1} parent=0
    #allocation3 [shape = 'u8[4096]{0}', space=vmem, size = 0x1000, scoped, tag = 'input window, operand 0, single buffered']
    #allocation4 [shape = 's32[1]{0}', space=sflag, size = 0x4, scoped, tag = 'scoped memory for tpu_custom_call.1']
    #allocation5 [shape = 's32[1]{0}', space=sflag, size = 0x4, scoped, tag = 'scoped memory for tpu_custom_call.1']
    #allocation6 [shape = 'u8[65536]{0}', space=vmem, size = 0x10000, scoped, tag = 'input window, operand 1, single buffered']
    #allocation7 [shape = 's32[1]{0}', space=sflag, size = 0x4, scoped, tag = 'scoped memory for tpu_custom_call.1']
    #allocation8 [shape = 'u8[65536]{0}', space=vmem, size = 0x10000, scoped, tag = 'input window, operand 3, single buffered']
    #allocation9 [shape = 'u8[4096]{0}', space=vmem, size = 0x1000, scoped, tag = 'output window, operand 0, single buffered']
    %10 = vsyncpa [#allocation4], 0
    %11 = vsyncpa [#allocation7], 0
    %12 = vsyncpa [#allocation5], 0
    // Predicated region
    $region2: #{tpu_custom_call.1} parent=1 // pred_check
      _
    $region3: #{tpu_custom_call.1} parent=1 // pred_check_branch
      %14 = sbr.rel (0) target = $region5
    $region4: #{tpu_custom_call.1} parent=1 // pred_region
      %16 = vsyncadd [#allocation4], 0
      %s18 = sshll.u32 %s0, 4
      %s19 = int_to_ptr.hbm [resolvable:$true] %s18
      %s20 = sshll.u32 [#allocation3], 4
      %s21 = int_to_ptr.vmem [resolvable:$true] %s20
      %23 = dma.hbm_to_vmem [thread:$0]  %s19, 128, %s21, [#allocation4]
    $region5: #{tpu_custom_call.1} parent=1 // pred_fallthru
      _
    // Predicated region
    $region6: #{tpu_custom_call.1} parent=1 // pred_check
      _
    $region7: #{tpu_custom_call.1} parent=1 // pred_check_branch
      %25 = sbr.rel (0) target = $region9
    $region8: #{tpu_custom_call.1} parent=1 // pred_region
      %27 = vsyncadd [#allocation7], 0
      %s28 = sshll.u32 %s1, 4
      %s29 = int_to_ptr.hbm [resolvable:$true] %s28
      %s30 = sshll.u32 [#allocation6], 4
      %s31 = int_to_ptr.vmem [resolvable:$true] %s30
      %36 = dma.hbm_to_vmem [thread:$0]  %s29, 2048, %s31, [#allocation7], 128, 128, 8
    $region9: #{tpu_custom_call.1} parent=1 // pred_fallthru
      _
    // Predicated region
    $region10: #{tpu_custom_call.1} parent=1 // pred_check
      _
    $region11: #{tpu_custom_call.1} parent=1 // pred_check_branch
      %38 = sbr.rel (0) target = $region13
    $region12: #{tpu_custom_call.1} parent=1 // pred_region
      _
    $region13: #{tpu_custom_call.1} parent=1 // pred_fallthru
      _
    // Predicated region
    $region14: #{tpu_custom_call.1} parent=1 // pred_check
      _
    $region15: #{tpu_custom_call.1} parent=1 // pred_check_branch
      %40 = sbr.rel (0) target = $region17
    $region16: #{tpu_custom_call.1} parent=1 // pred_region
      %42 = vsyncadd [#allocation7], 0
      %s43 = sshll.u32 %s3, 4
      %s44 = int_to_ptr.hbm [resolvable:$true] %s43
      %s45 = sshll.u32 [#allocation8], 4
      %s46 = int_to_ptr.vmem [resolvable:$true] %s45
      %51 = dma.hbm_to_vmem [thread:$0]  %s44, 2048, %s46, [#allocation7], 128, 128, 8
    $region17: #{tpu_custom_call.1} parent=1 // pred_fallthru
      _
    // Predicated region
    $region18: #{tpu_custom_call.1} parent=1 // pred_check
      _
    $region19: #{tpu_custom_call.1} parent=1 // pred_check_branch
      %53 = sbr.rel (0) target = $region21
    $region20: #{tpu_custom_call.1} parent=1 // pred_region
      _
    $region21: #{tpu_custom_call.1} parent=1 // pred_fallthru
      _
    // Predicated region
    $region22: #{tpu_custom_call.1} parent=1 // pred_check
      _
    $region23: #{tpu_custom_call.1} parent=1 // pred_check_branch
      %55 = sbr.rel (0) target = $region25
    $region24: #{tpu_custom_call.1} parent=1 // pred_region
      %57 = dma.done [#allocation4], 128
    $region25: #{tpu_custom_call.1} parent=1 // pred_fallthru
      _
    // Predicated region
    $region26: #{tpu_custom_call.1} parent=1 // pred_check
      _
    $region27: #{tpu_custom_call.1} parent=1 // pred_check_branch
      %59 = sbr.rel (0) target = $region29
    $region28: #{tpu_custom_call.1} parent=1 // pred_region
      %61 = dma.done [#allocation7], 2048
    $region29: #{tpu_custom_call.1} parent=1 // pred_fallthru
      _
    // Predicated region
    $region30: #{tpu_custom_call.1} parent=1 // pred_check
      _
    $region31: #{tpu_custom_call.1} parent=1 // pred_check_branch
      %63 = sbr.rel (0) target = $region33
    $region32: #{tpu_custom_call.1} parent=1 // pred_region
      %65 = dma.done [#allocation7], 2048
    $region33: #{tpu_custom_call.1} parent=1 // pred_fallthru
      _
    %p66 = scmp.eq.s32.totalorder 0, 0
    // Predicated region
    $region34: #{tpu_custom_call.1} parent=1 // pred_check
      %p67 = pneg %p66
    $region35: #{tpu_custom_call.1} parent=1 // pred_check_branch
      %69 = sbr.rel (%p67) target = $region37
    $region36: #{tpu_custom_call.1} parent=1 // pred_region
      %70 = vst [vmem:[#allocation2] sm:$0xff] 0.0
    $region37: #{tpu_custom_call.1} parent=1 // pred_fallthru
      _
    %v71 = vld [vmem:[#allocation3] sm:$0xff]
    %v72 = vld [vmem:[#allocation6] sm:$0xff]
    %v73 = vld [vmem:[#allocation6 + $0x8] sm:$0xff]
    %v74 = vld [vmem:[#allocation6 + $0x10] sm:$0xff]
    %v75 = vld [vmem:[#allocation6 + $0x18] sm:$0xff]
    %v76 = vld [vmem:[#allocation6 + $0x20] sm:$0xff]
    %v77 = vld [vmem:[#allocation6 + $0x28] sm:$0xff]
    %v78 = vld [vmem:[#allocation6 + $0x30] sm:$0xff]
    %v79 = vld [vmem:[#allocation6 + $0x38] sm:$0xff]
    %v80 = vld [vmem:[#allocation6 + $0x40] sm:$0xff]
    %v81 = vld [vmem:[#allocation6 + $0x48] sm:$0xff]
    %v82 = vld [vmem:[#allocation6 + $0x50] sm:$0xff]
    %v83 = vld [vmem:[#allocation6 + $0x58] sm:$0xff]
    %v84 = vld [vmem:[#allocation6 + $0x60] sm:$0xff]
    %v85 = vld [vmem:[#allocation6 + $0x68] sm:$0xff]
    %v86 = vld [vmem:[#allocation6 + $0x70] sm:$0xff]
    %v87 = vld [vmem:[#allocation6 + $0x78] sm:$0xff]
    %v88 = vld [vmem:[%s2] sm:$0x1]
    %v90 = vperm.slane %v88, 0
    %92 = vmatpush.msra.mxu0 %v87
    %93 = vmatpush.msra.mxu0 %v86
    %94 = vmatpush.msra.mxu0 %v85
    %95 = vmatpush.msra.mxu0 %v84
    %96 = vmatpush.msra.mxu0 %v83
    %97 = vmatpush.msra.mxu0 %v82
    %98 = vmatpush.msra.mxu0 %v81
    %99 = vmatpush.msra.mxu0 %v80
    %100 = vmatpush.msra.mxu0 %v79
    %101 = vmatpush.msra.mxu0 %v78
    %102 = vmatpush.msra.mxu0 %v77
    %103 = vmatpush.msra.mxu0 %v76
    %104 = vmatpush.msra.mxu0 %v75
    %105 = vmatpush.msra.mxu0 %v74
    %106 = vmatpush.msra.mxu0 %v73
    %107 = vmatpush.msra.mxu0 %v72
    %108 = vmatmul.f32.gmra.mxu0 %v71
    %v109 = vpop.f32.mrf.mxu0
    %v110 = vadd.f32 %v90, %v109
    %111 = vdwg.mxu0
    %v112 = vmax.f32 %v110, 0.0
    %v113 = vld [vmem:[#allocation2] sm:$0xff]
    %v114 = vld [vmem:[#allocation8] sm:$0xff]
    %v115 = vld [vmem:[#allocation8 + $0x8] sm:$0xff]
    %v116 = vld [vmem:[#allocation8 + $0x10] sm:$0xff]
    %v117 = vld [vmem:[#allocation8 + $0x18] sm:$0xff]
    %v118 = vld [vmem:[#allocation8 + $0x20] sm:$0xff]
    %v119 = vld [vmem:[#allocation8 + $0x28] sm:$0xff]
    %v120 = vld [vmem:[#allocation8 + $0x30] sm:$0xff]
    %v121 = vld [vmem:[#allocation8 + $0x38] sm:$0xff]
    %v122 = vld [vmem:[#allocation8 + $0x40] sm:$0xff]
    %v123 = vld [vmem:[#allocation8 + $0x48] sm:$0xff]
    %v124 = vld [vmem:[#allocation8 + $0x50] sm:$0xff]
    %v125 = vld [vmem:[#allocation8 + $0x58] sm:$0xff]
    %v126 = vld [vmem:[#allocation8 + $0x60] sm:$0xff]
    %v127 = vld [vmem:[#allocation8 + $0x68] sm:$0xff]
    %v128 = vld [vmem:[#allocation8 + $0x70] sm:$0xff]
    %v129 = vld [vmem:[#allocation8 + $0x78] sm:$0xff]
    %130 = vmatpush.msra.mxu0 %v129
    %131 = vmatpush.msra.mxu0 %v128
    %132 = vmatpush.msra.mxu0 %v127
    %133 = vmatpush.msra.mxu0 %v126
    %134 = vmatpush.msra.mxu0 %v125
    %135 = vmatpush.msra.mxu0 %v124
    %136 = vmatpush.msra.mxu0 %v123
    %137 = vmatpush.msra.mxu0 %v122
    %138 = vmatpush.msra.mxu0 %v121
    %139 = vmatpush.msra.mxu0 %v120
    %140 = vmatpush.msra.mxu0 %v119
    %141 = vmatpush.msra.mxu0 %v118
    %142 = vmatpush.msra.mxu0 %v117
    %143 = vmatpush.msra.mxu0 %v116
    %144 = vmatpush.msra.mxu0 %v115
    %145 = vmatpush.msra.mxu0 %v114
    %146 = vmatmul.f32.gmra.mxu0 %v112
    %v147 = vpop.f32.mrf.mxu0
    %v148 = vadd.f32 0.0, %v147
    %149 = vdwg.mxu0
    %v150 = vadd.f32 %v113, %v148
    %151 = vst [vmem:[#allocation2] sm:$0xff] %v150
    // Predicated region
    $region38: #{tpu_custom_call.1} parent=1 // pred_check
      %p152 = pneg %p66
    $region39: #{tpu_custom_call.1} parent=1 // pred_check_branch
      %154 = sbr.rel (%p152) target = $region41
    $region40: #{tpu_custom_call.1} parent=1 // pred_region
      %v155 = vld [vmem:[#allocation2] sm:$0xff]
      %v156 = vld [vmem:[%s4] sm:$0x1]
      %v158 = vperm.slane %v156, 0
      %v160 = vadd.f32 %v155, %v158
      %161 = vst [vmem:[#allocation9] sm:$0xff] %v160
    $region41: #{tpu_custom_call.1} parent=1 // pred_fallthru
      _
    // Predicated region
    $region42: #{tpu_custom_call.1} parent=1 // pred_check
      _
    $region43: #{tpu_custom_call.1} parent=1 // pred_check_branch
      %163 = sbr.rel (0) target = $region45
    $region44: #{tpu_custom_call.1} parent=1 // pred_region
      %165 = vsyncadd [#allocation5], 0
      %s167 = sshll.u32 [#allocation9], 4
      %s168 = int_to_ptr.vmem [resolvable:$true] %s167
      %s169 = sshll.u32 %s5, 4
      %s170 = int_to_ptr.hbm [resolvable:$true] %s169
      %172 = dma.vmem_to_hbm [thread:$0]  %s168, 128, %s170, [#allocation5]
    $region45: #{tpu_custom_call.1} parent=1 // pred_fallthru
      _
    // Predicated region
    $region46: #{tpu_custom_call.1} parent=1 // pred_check
      _
    $region47: #{tpu_custom_call.1} parent=1 // pred_check_branch
      %174 = sbr.rel (0) target = $region49
    $region48: #{tpu_custom_call.1} parent=1 // pred_region
      %176 = dma.done [#allocation5], 128
    $region49: #{tpu_custom_call.1} parent=1 // pred_fallthru
      _
    %177 = vsyncpa [#allocation4], 1
    %178 = vsyncpa [#allocation7], 1
    %179 = vsyncpa [#allocation5], 1

</llo_original>
